<compile_context>
chip_gen: v5e
topology: v5e:2x2
jax: 0.10.0
libtpu: 0.0.40
codegen_flags: <defaults>
</compile_context>

<pallas_src>
import math
from types import SimpleNamespace

import jax
import jax.numpy as jnp
from jax import lax
from jax.experimental import pallas as pl
from jax.experimental.pallas import tpu as pltpu


# ----------------------------- helpers ------------------------------------- #

def _round_up(x, m):
    return ((x + m - 1) // m) * m


def _batch_tiling(B, S, dim, tables_bytes, *, max_tile=1024, stream_budget=24 << 20):
    """Pick rows-per-grid-step (TB, multiple of 8) from a VMEM budget.

    Everything streamed per grid step is double-buffered by the pipeline:
    eps + latent tiles (S*dim f32 per row each) and the mu/logvar/std tiles.
    The resident tables (double-buffered by default) are subtracted from the
    budget.  The budget is chosen to fit comfortably under v7x's 64 MiB VMEM.
    """
    Bp = _round_up(max(B, 1), 8)
    bytes_per_row = 2 * (2 * S * dim * 4) + 2 * (3 * dim * 4)
    avail = max(stream_budget - 2 * tables_bytes, 2 << 20)
    tb = max(8, min(max_tile, avail // bytes_per_row))
    tb = max(8, (tb // 8) * 8)
    TB = min(tb, Bp)
    Bp = _round_up(Bp, TB)
    return Bp, TB


def _vmem_limit_bytes(TB, S, dim, tables_bytes):
    need = 2 * tables_bytes + TB * (2 * (2 * S * dim * 4) + 2 * (3 * dim * 4))
    # Raise v5e's 16 MiB default; stay well under v7x's 64 MiB physical VMEM.
    return int(min(max(need + (4 << 20), 32 << 20), 48 << 20))


# ----------------------------- kernels ------------------------------------- #

def _gather_rows(idx_ref, mu_w_ref, lv_w_ref, mu_ref, lv_ref):
    """mu_ref[r] = weight_mu[idx[base+r]]; lv_ref[r] = weight_logvar[idx[base+r]].

    idx lives in SMEM (scalar prefetch); the tables are VMEM-resident.  The loop
    is manually unrolled 8x (TB is always a multiple of 8) to amortize the
    per-row scalar/loop overhead.
    """
    tb = mu_ref.shape[0]                       # static, multiple of 8
    base = pl.program_id(0) * tb

    def body(blk, carry):
        r0 = blk * 8
        for u in range(8):                     # manual unroll
            r = r0 + u
            i = idx_ref[base + r]              # scalar read from SMEM
            mu_ref[pl.ds(r, 1), :] = mu_w_ref[pl.ds(i, 1), :]
            lv_ref[pl.ds(r, 1), :] = lv_w_ref[pl.ds(i, 1), :]
        return carry

    lax.fori_loop(0, tb // 8, body, 0)


def _vad_train_kernel(idx_ref, mu_w_ref, lv_w_ref, eps_ref,
                      mu_ref, lv_ref, std_ref, lat_ref):
    # Gather the embedding rows for this batch tile.
    _gather_rows(idx_ref, mu_w_ref, lv_w_ref, mu_ref, lv_ref)

    mu = mu_ref[...]                           # (TB, dim)
    std = jnp.exp(0.5 * lv_ref[...])           # (TB, dim)
    std_ref[...] = std

    # Fused reparameterization over the dense slot-major tile.
    # eps_ref / lat_ref are (S, TB, dim): broadcasting mu/std along the leading
    # (untiled) axis keeps every slab a dense (TB, 128) store.
    lat_ref[...] = mu[None, :, :] + eps_ref[...] * std[None, :, :]


def _vad_eval_kernel(idx_ref, mu_w_ref, lv_w_ref, mu_ref, lv_ref, std_ref):
    _gather_rows(idx_ref, mu_w_ref, lv_w_ref, mu_ref, lv_ref)
    std_ref[...] = jnp.exp(0.5 * lv_ref[...])


# ----------------------------- wrappers ------------------------------------ #

def vad_logvar_train(idx, weight_mu, weight_logvar, key, num_samples):
    """idx: (B,) int; weights: (N, dim) f32; num_samples = 1 + #augment.

    Returns padded (Bp, dim) mu/logvar/std and (S, Bp, dim) latent stack
    (slot 0 = base latent sample, slots 1.. = augmented / second samples).
    """
    B = idx.shape[0]
    N, dim = weight_mu.shape
    S = int(num_samples)
    tables_bytes = 2 * N * dim * 4
    Bp, TB = _batch_tiling(B, S, dim, tables_bytes)

    idx_p = idx.astype(jnp.int32)
    if Bp != B:
        idx_p = jnp.pad(idx_p, (0, Bp - B))

    # Draw the noise directly at the padded, slot-major shape: no jnp.pad pass,
    # and the kernel sees fully dense (TB, dim) slabs.
    eps = jax.random.normal(key, (S, Bp, dim), dtype=jnp.float32)

    grid_spec = pltpu.PrefetchScalarGridSpec(
        num_scalar_prefetch=1,                  # idx -> SMEM, drives in-kernel gather
        grid=(Bp // TB,),
        in_specs=[
            pl.BlockSpec((N, dim), lambda g, idx_ref: (0, 0)),         # mu table (resident)
            pl.BlockSpec((N, dim), lambda g, idx_ref: (0, 0)),         # logvar table (resident)
            pl.BlockSpec((S, TB, dim), lambda g, idx_ref: (0, g, 0)),  # noise tile (dense)
        ],
        out_specs=[
            pl.BlockSpec((TB, dim), lambda g, idx_ref: (g, 0)),        # mu
            pl.BlockSpec((TB, dim), lambda g, idx_ref: (g, 0)),        # logvar
            pl.BlockSpec((TB, dim), lambda g, idx_ref: (g, 0)),        # std
            pl.BlockSpec((S, TB, dim), lambda g, idx_ref: (0, g, 0)),  # latent stack
        ],
    )
    out_shapes = (
        jax.ShapeDtypeStruct((Bp, dim), jnp.float32),
        jax.ShapeDtypeStruct((Bp, dim), jnp.float32),
        jax.ShapeDtypeStruct((Bp, dim), jnp.float32),
        jax.ShapeDtypeStruct((S, Bp, dim), jnp.float32),
    )
    mu, logvar, std, lat_all = pl.pallas_call(
        _vad_train_kernel,
        out_shape=out_shapes,
        grid_spec=grid_spec,
        compiler_params=pltpu.CompilerParams(
            dimension_semantics=("parallel",),
            vmem_limit_bytes=_vmem_limit_bytes(TB, S, dim, tables_bytes)),
    )(idx_p, weight_mu.astype(jnp.float32), weight_logvar.astype(jnp.float32), eps)
    return mu, logvar, std, lat_all


def vad_logvar_eval(idx, weight_mu, weight_logvar):
    # TODO(synk): for tiny batches a plain XLA gather + exp is cheaper than the
    #             fixed pallas_call cost; kept in Pallas here for a single path.
    B = idx.shape[0]
    N, dim = weight_mu.shape
    tables_bytes = 2 * N * dim * 4
    Bp, TB = _batch_tiling(B, 0, dim, tables_bytes)

    idx_p = idx.astype(jnp.int32)
    if Bp != B:
        idx_p = jnp.pad(idx_p, (0, Bp - B))

    grid_spec = pltpu.PrefetchScalarGridSpec(
        num_scalar_prefetch=1,
        grid=(Bp // TB,),
        in_specs=[
            pl.BlockSpec((N, dim), lambda g, idx_ref: (0, 0)),
            pl.BlockSpec((N, dim), lambda g, idx_ref: (0, 0)),
        ],
        out_specs=[
            pl.BlockSpec((TB, dim), lambda g, idx_ref: (g, 0)),
            pl.BlockSpec((TB, dim), lambda g, idx_ref: (g, 0)),
            pl.BlockSpec((TB, dim), lambda g, idx_ref: (g, 0)),
        ],
    )
    out_shapes = (
        jax.ShapeDtypeStruct((Bp, dim), jnp.float32),
        jax.ShapeDtypeStruct((Bp, dim), jnp.float32),
        jax.ShapeDtypeStruct((Bp, dim), jnp.float32),
    )
    mu, logvar, std = pl.pallas_call(
        _vad_eval_kernel,
        out_shape=out_shapes,
        grid_spec=grid_spec,
        compiler_params=pltpu.CompilerParams(
            dimension_semantics=("parallel",),
            vmem_limit_bytes=_vmem_limit_bytes(TB, 0, dim, tables_bytes)),
    )(idx_p, weight_mu.astype(jnp.float32), weight_logvar.astype(jnp.float32))
    return mu, logvar, std


# ----------------------------- module -------------------------------------- #

class VADLogVarPallas:
    """JAX/Pallas re-implementation of the PyTorch VADLogVar module (forward only)."""

    def __init__(self, cfg, N, dim, key):
        self.cfg = cfg
        self.N = N
        self.dim = dim
        k_mu, k_lv = jax.random.split(key)
        mu_std = (1.0 / math.sqrt(dim)) if cfg.mu_init_std is None else cfg.mu_init_std
        lv_std = (1.0 / math.sqrt(dim)) if cfg.logvar_init_std is None else cfg.logvar_init_std
        self.weight_mu = mu_std * jax.random.normal(k_mu, (N, dim), dtype=jnp.float32)
        self.weight_logvar = (cfg.logvar_init_mean
                              + lv_std * jax.random.normal(k_lv, (N, dim), dtype=jnp.float32))
        self.training = True
        print('[VADLogVar Embedding] #entries: {}; #dims: {}; cfg: {}'.format(N, dim, cfg))

    def __call__(self, idx, *, num_augment_pts, key=None):
        idx = idx.astype(jnp.int32)
        B = idx.shape[0]
        if self.training:
            if self.cfg.augment_latent:
                A = int(num_augment_pts)
            elif self.cfg.sample_twice:
                A = 1
            else:
                A = 0
            S = 1 + A
            if key is None:
                key = jax.random.PRNGKey(0)
            mu, logvar, std, lat_all = vad_logvar_train(
                idx, self.weight_mu, self.weight_logvar, key, S)
            mu, logvar, std = mu[:B], logvar[:B], std[:B]
            latent = lat_all[0, :B]                                   # (B, dim)
            if self.cfg.augment_latent:
                aug = jnp.transpose(lat_all[1:, :B, :], (1, 0, 2))     # (B, A, dim)
            elif self.cfg.sample_twice:
                aug = lat_all[1, :B]                                   # independent 2nd sample
            else:
                aug = latent
            return {'latent_code': latent, 'latent_code_augment': aug,
                    'mu': mu, 'logvar': logvar, 'std': std}
        else:
            print('[VADLogVar Embedding] Test mode forward')
            mu, logvar, std = vad_logvar_eval(idx, self.weight_mu, self.weight_logvar)
            mu, logvar, std = mu[:B], logvar[:B], std[:B]
            return {'latent_code': mu, 'mu': mu, 'logvar': logvar, 'std': std}


# ----------------------------- test ----------------------------------------- #

if __name__ == "__main__":
    cfg = SimpleNamespace(mu_init_std=None, logvar_init_std=None,
                          logvar_init_mean=-4.0, fix_var=False,
                          augment_latent=True, sample_twice=False)

    N, dim, B, A = 32, 128, 8, 8
    key = jax.random.PRNGKey(0)
    k_params, k_idx, k_noise = jax.random.split(key, 3)

    module = VADLogVarPallas(cfg, N, dim, k_params)
    idx = jax.random.randint(k_idx, (B,), 0, N, dtype=jnp.int32)

    out = module(idx, num_augment_pts=A, key=k_noise)
    jax.block_until_ready(out)

    # Pure-JAX reference: reproduce the exact noise the wrapper drew
    # (slot-major (S, Bp, dim) with the same key).
    S = 1 + A
    Bp, _ = _batch_tiling(B, S, dim, 2 * N * dim * 4)
    eps = jax.random.normal(k_noise, (S, Bp, dim), dtype=jnp.float32)[:, :B, :]

    ref_mu = module.weight_mu[idx]
    ref_logvar = module.weight_logvar[idx]
    ref_std = jnp.exp(0.5 * ref_logvar)
    ref_latent = ref_mu + eps[0] * ref_std
    ref_aug = ref_mu[:, None, :] + jnp.transpose(eps[1:], (1, 0, 2)) * ref_std[:, None, :]

    assert out['latent_code'].shape == (B, dim)
    assert out['latent_code_augment'].shape == (B, A, dim)
    assert jnp.allclose(out['mu'], ref_mu, atol=1e-6)
    assert jnp.allclose(out['logvar'], ref_logvar, atol=1e-6)
    assert jnp.allclose(out['std'], ref_std, rtol=1e-5, atol=1e-6)
    assert jnp.allclose(out['latent_code'], ref_latent, rtol=1e-5, atol=1e-5)
    assert jnp.allclose(out['latent_code_augment'], ref_aug, rtol=1e-5, atol=1e-5)

    # Eval-mode path (no sampling kernel).
    module.training = False
    out_eval = module(idx, num_augment_pts=A)
    jax.block_until_ready(out_eval)
    assert out_eval['latent_code'].shape == (B, dim)
    assert jnp.allclose(out_eval['latent_code'], ref_mu, atol=1e-6)
    assert jnp.allclose(out_eval['std'], ref_std, rtol=1e-5, atol=1e-6)

    print("KERNEL_OK")
</pallas_src>

<mosaic_0001>
module attributes {stable_mosaic.version = 11 : i64} {
  func.func @_vad_train_kernel(%arg0: i32, %arg1: memref<8xi32, #tpu.memory_space<smem>>, %arg2: memref<32x128xf32, #tpu.memory_space<vmem>>, %arg3: memref<32x128xf32, #tpu.memory_space<vmem>>, %arg4: memref<9x8x128xf32, #tpu.memory_space<vmem>>, %arg5: memref<8x128xf32, #tpu.memory_space<vmem>>, %arg6: memref<8x128xf32, #tpu.memory_space<vmem>>, %arg7: memref<8x128xf32, #tpu.memory_space<vmem>>, %arg8: memref<9x8x128xf32, #tpu.memory_space<vmem>>) attributes {dimension_semantics = [#tpu.dimension_semantics<parallel>], iteration_bounds = array<i64: 1>, scalar_prefetch = 1 : i64, scratch_operands = 0 : i64, tpu.core_type = #tpu.core_type<tc>, window_params = [{pipeline_mode = #tpu.pipeline_mode<synchronous>, transform_indices = @transform_0, window_bounds = array<i64: 32, 128>}, {pipeline_mode = #tpu.pipeline_mode<synchronous>, transform_indices = @transform_1, window_bounds = array<i64: 32, 128>}, {transform_indices = @transform_2, window_bounds = array<i64: 9, 8, 128>}, {transform_indices = @transform_3, window_bounds = array<i64: 8, 128>}, {transform_indices = @transform_4, window_bounds = array<i64: 8, 128>}, {transform_indices = @transform_5, window_bounds = array<i64: 8, 128>}, {transform_indices = @transform_6, window_bounds = array<i64: 9, 8, 128>}]} {
    %c8_i32 = arith.constant 8 : i32
    %0 = arith.muli %arg0, %c8_i32 : i32
    %c0_i32 = arith.constant 0 : i32
    %c8_i32_0 = arith.constant 8 : i32
    %1 = arith.muli %c0_i32, %c8_i32_0 : i32
    %c0_i32_1 = arith.constant 0 : i32
    %2 = arith.addi %1, %c0_i32_1 : i32
    %3 = arith.addi %0, %2 : i32
    %4 = arith.index_cast %3 : i32 to index
    %5 = memref.load %arg1[%4] : memref<8xi32, #tpu.memory_space<smem>>
    %6 = arith.index_cast %5 : i32 to index
    %c0 = arith.constant 0 : index
    %7 = vector.load %arg2[%6, %c0] : memref<32x128xf32, #tpu.memory_space<vmem>>, vector<1x128xf32>
    %8 = arith.index_cast %2 : i32 to index
    %c0_2 = arith.constant 0 : index
    %9 = vector.load %arg5[%8, %c0_2] : memref<8x128xf32, #tpu.memory_space<vmem>>, vector<1x128xf32>
    tpu.vector_store %arg5[%8, %c0_2], %7 {strides = array<i32>} : memref<8x128xf32, #tpu.memory_space<vmem>>, vector<1x128xf32>,
    %10 = arith.index_cast %5 : i32 to index
    %c0_3 = arith.constant 0 : index
    %11 = vector.load %arg3[%10, %c0_3] : memref<32x128xf32, #tpu.memory_space<vmem>>, vector<1x128xf32>
    %12 = arith.index_cast %2 : i32 to index
    %c0_4 = arith.constant 0 : index
    %13 = vector.load %arg6[%12, %c0_4] : memref<8x128xf32, #tpu.memory_space<vmem>>, vector<1x128xf32>
    tpu.vector_store %arg6[%12, %c0_4], %11 {strides = array<i32>} : memref<8x128xf32, #tpu.memory_space<vmem>>, vector<1x128xf32>,
    %c1_i32 = arith.constant 1 : i32
    %14 = arith.addi %1, %c1_i32 : i32
    %15 = arith.addi %0, %14 : i32
    %16 = arith.index_cast %15 : i32 to index
    %17 = memref.load %arg1[%16] : memref<8xi32, #tpu.memory_space<smem>>
    %18 = arith.index_cast %17 : i32 to index
    %c0_5 = arith.constant 0 : index
    %19 = vector.load %arg2[%18, %c0_5] : memref<32x128xf32, #tpu.memory_space<vmem>>, vector<1x128xf32>
    %20 = arith.index_cast %14 : i32 to index
    %c0_6 = arith.constant 0 : index
    %21 = vector.load %arg5[%20, %c0_6] : memref<8x128xf32, #tpu.memory_space<vmem>>, vector<1x128xf32>
    tpu.vector_store %arg5[%20, %c0_6], %19 {strides = array<i32>} : memref<8x128xf32, #tpu.memory_space<vmem>>, vector<1x128xf32>,
    %22 = arith.index_cast %17 : i32 to index
    %c0_7 = arith.constant 0 : index
    %23 = vector.load %arg3[%22, %c0_7] : memref<32x128xf32, #tpu.memory_space<vmem>>, vector<1x128xf32>
    %24 = arith.index_cast %14 : i32 to index
    %c0_8 = arith.constant 0 : index
    %25 = vector.load %arg6[%24, %c0_8] : memref<8x128xf32, #tpu.memory_space<vmem>>, vector<1x128xf32>
    tpu.vector_store %arg6[%24, %c0_8], %23 {strides = array<i32>} : memref<8x128xf32, #tpu.memory_space<vmem>>, vector<1x128xf32>,
    %c2_i32 = arith.constant 2 : i32
    %26 = arith.addi %1, %c2_i32 : i32
    %27 = arith.addi %0, %26 : i32
    %28 = arith.index_cast %27 : i32 to index
    %29 = memref.load %arg1[%28] : memref<8xi32, #tpu.memory_space<smem>>
    %30 = arith.index_cast %29 : i32 to index
    %c0_9 = arith.constant 0 : index
    %31 = vector.load %arg2[%30, %c0_9] : memref<32x128xf32, #tpu.memory_space<vmem>>, vector<1x128xf32>
    %32 = arith.index_cast %26 : i32 to index
    %c0_10 = arith.constant 0 : index
    %33 = vector.load %arg5[%32, %c0_10] : memref<8x128xf32, #tpu.memory_space<vmem>>, vector<1x128xf32>
    tpu.vector_store %arg5[%32, %c0_10], %31 {strides = array<i32>} : memref<8x128xf32, #tpu.memory_space<vmem>>, vector<1x128xf32>,
    %34 = arith.index_cast %29 : i32 to index
    %c0_11 = arith.constant 0 : index
    %35 = vector.load %arg3[%34, %c0_11] : memref<32x128xf32, #tpu.memory_space<vmem>>, vector<1x128xf32>
    %36 = arith.index_cast %26 : i32 to index
    %c0_12 = arith.constant 0 : index
    %37 = vector.load %arg6[%36, %c0_12] : memref<8x128xf32, #tpu.memory_space<vmem>>, vector<1x128xf32>
    tpu.vector_store %arg6[%36, %c0_12], %35 {strides = array<i32>} : memref<8x128xf32, #tpu.memory_space<vmem>>, vector<1x128xf32>,
    %c3_i32 = arith.constant 3 : i32
    %38 = arith.addi %1, %c3_i32 : i32
    %39 = arith.addi %0, %38 : i32
    %40 = arith.index_cast %39 : i32 to index
    %41 = memref.load %arg1[%40] : memref<8xi32, #tpu.memory_space<smem>>
    %42 = arith.index_cast %41 : i32 to index
    %c0_13 = arith.constant 0 : index
    %43 = vector.load %arg2[%42, %c0_13] : memref<32x128xf32, #tpu.memory_space<vmem>>, vector<1x128xf32>
    %44 = arith.index_cast %38 : i32 to index
    %c0_14 = arith.constant 0 : index
    %45 = vector.load %arg5[%44, %c0_14] : memref<8x128xf32, #tpu.memory_space<vmem>>, vector<1x128xf32>
    tpu.vector_store %arg5[%44, %c0_14], %43 {strides = array<i32>} : memref<8x128xf32, #tpu.memory_space<vmem>>, vector<1x128xf32>,
    %46 = arith.index_cast %41 : i32 to index
    %c0_15 = arith.constant 0 : index
    %47 = vector.load %arg3[%46, %c0_15] : memref<32x128xf32, #tpu.memory_space<vmem>>, vector<1x128xf32>
    %48 = arith.index_cast %38 : i32 to index
    %c0_16 = arith.constant 0 : index
    %49 = vector.load %arg6[%48, %c0_16] : memref<8x128xf32, #tpu.memory_space<vmem>>, vector<1x128xf32>
    tpu.vector_store %arg6[%48, %c0_16], %47 {strides = array<i32>} : memref<8x128xf32, #tpu.memory_space<vmem>>, vector<1x128xf32>,
    %c4_i32 = arith.constant 4 : i32
    %50 = arith.addi %1, %c4_i32 : i32
    %51 = arith.addi %0, %50 : i32
    %52 = arith.index_cast %51 : i32 to index
    %53 = memref.load %arg1[%52] : memref<8xi32, #tpu.memory_space<smem>>
    %54 = arith.index_cast %53 : i32 to index
    %c0_17 = arith.constant 0 : index
    %55 = vector.load %arg2[%54, %c0_17] : memref<32x128xf32, #tpu.memory_space<vmem>>, vector<1x128xf32>
    %56 = arith.index_cast %50 : i32 to index
    %c0_18 = arith.constant 0 : index
    %57 = vector.load %arg5[%56, %c0_18] : memref<8x128xf32, #tpu.memory_space<vmem>>, vector<1x128xf32>
    tpu.vector_store %arg5[%56, %c0_18], %55 {strides = array<i32>} : memref<8x128xf32, #tpu.memory_space<vmem>>, vector<1x128xf32>,
    %58 = arith.index_cast %53 : i32 to index
    %c0_19 = arith.constant 0 : index
    %59 = vector.load %arg3[%58, %c0_19] : memref<32x128xf32, #tpu.memory_space<vmem>>, vector<1x128xf32>
    %60 = arith.index_cast %50 : i32 to index
    %c0_20 = arith.constant 0 : index
    %61 = vector.load %arg6[%60, %c0_20] : memref<8x128xf32, #tpu.memory_space<vmem>>, vector<1x128xf32>
    tpu.vector_store %arg6[%60, %c0_20], %59 {strides = array<i32>} : memref<8x128xf32, #tpu.memory_space<vmem>>, vector<1x128xf32>,
    %c5_i32 = arith.constant 5 : i32
    %62 = arith.addi %1, %c5_i32 : i32
    %63 = arith.addi %0, %62 : i32
    %64 = arith.index_cast %63 : i32 to index
    %65 = memref.load %arg1[%64] : memref<8xi32, #tpu.memory_space<smem>>
    %66 = arith.index_cast %65 : i32 to index
    %c0_21 = arith.constant 0 : index
    %67 = vector.load %arg2[%66, %c0_21] : memref<32x128xf32, #tpu.memory_space<vmem>>, vector<1x128xf32>
    %68 = arith.index_cast %62 : i32 to index
    %c0_22 = arith.constant 0 : index
    %69 = vector.load %arg5[%68, %c0_22] : memref<8x128xf32, #tpu.memory_space<vmem>>, vector<1x128xf32>
    tpu.vector_store %arg5[%68, %c0_22], %67 {strides = array<i32>} : memref<8x128xf32, #tpu.memory_space<vmem>>, vector<1x128xf32>,
    %70 = arith.index_cast %65 : i32 to index
    %c0_23 = arith.constant 0 : index
    %71 = vector.load %arg3[%70, %c0_23] : memref<32x128xf32, #tpu.memory_space<vmem>>, vector<1x128xf32>
    %72 = arith.index_cast %62 : i32 to index
    %c0_24 = arith.constant 0 : index
    %73 = vector.load %arg6[%72, %c0_24] : memref<8x128xf32, #tpu.memory_space<vmem>>, vector<1x128xf32>
    tpu.vector_store %arg6[%72, %c0_24], %71 {strides = array<i32>} : memref<8x128xf32, #tpu.memory_space<vmem>>, vector<1x128xf32>,
    %c6_i32 = arith.constant 6 : i32
    %74 = arith.addi %1, %c6_i32 : i32
    %75 = arith.addi %0, %74 : i32
    %76 = arith.index_cast %75 : i32 to index
    %77 = memref.load %arg1[%76] : memref<8xi32, #tpu.memory_space<smem>>
    %78 = arith.index_cast %77 : i32 to index
    %c0_25 = arith.constant 0 : index
    %79 = vector.load %arg2[%78, %c0_25] : memref<32x128xf32, #tpu.memory_space<vmem>>, vector<1x128xf32>
    %80 = arith.index_cast %74 : i32 to index
    %c0_26 = arith.constant 0 : index
    %81 = vector.load %arg5[%80, %c0_26] : memref<8x128xf32, #tpu.memory_space<vmem>>, vector<1x128xf32>
    tpu.vector_store %arg5[%80, %c0_26], %79 {strides = array<i32>} : memref<8x128xf32, #tpu.memory_space<vmem>>, vector<1x128xf32>,
    %82 = arith.index_cast %77 : i32 to index
    %c0_27 = arith.constant 0 : index
    %83 = vector.load %arg3[%82, %c0_27] : memref<32x128xf32, #tpu.memory_space<vmem>>, vector<1x128xf32>
    %84 = arith.index_cast %74 : i32 to index
    %c0_28 = arith.constant 0 : index
    %85 = vector.load %arg6[%84, %c0_28] : memref<8x128xf32, #tpu.memory_space<vmem>>, vector<1x128xf32>
    tpu.vector_store %arg6[%84, %c0_28], %83 {strides = array<i32>} : memref<8x128xf32, #tpu.memory_space<vmem>>, vector<1x128xf32>,
    %c7_i32 = arith.constant 7 : i32
    %86 = arith.addi %1, %c7_i32 : i32
    %87 = arith.addi %0, %86 : i32
    %88 = arith.index_cast %87 : i32 to index
    %89 = memref.load %arg1[%88] : memref<8xi32, #tpu.memory_space<smem>>
    %90 = arith.index_cast %89 : i32 to index
    %c0_29 = arith.constant 0 : index
    %91 = vector.load %arg2[%90, %c0_29] : memref<32x128xf32, #tpu.memory_space<vmem>>, vector<1x128xf32>
    %92 = arith.index_cast %86 : i32 to index
    %c0_30 = arith.constant 0 : index
    %93 = vector.load %arg5[%92, %c0_30] : memref<8x128xf32, #tpu.memory_space<vmem>>, vector<1x128xf32>
    tpu.vector_store %arg5[%92, %c0_30], %91 {strides = array<i32>} : memref<8x128xf32, #tpu.memory_space<vmem>>, vector<1x128xf32>,
    %94 = arith.index_cast %89 : i32 to index
    %c0_31 = arith.constant 0 : index
    %95 = vector.load %arg3[%94, %c0_31] : memref<32x128xf32, #tpu.memory_space<vmem>>, vector<1x128xf32>
    %96 = arith.index_cast %86 : i32 to index
    %c0_32 = arith.constant 0 : index
    %97 = vector.load %arg6[%96, %c0_32] : memref<8x128xf32, #tpu.memory_space<vmem>>, vector<1x128xf32>
    tpu.vector_store %arg6[%96, %c0_32], %95 {strides = array<i32>} : memref<8x128xf32, #tpu.memory_space<vmem>>, vector<1x128xf32>,
    %c1_i32_33 = arith.constant 1 : i32
    %c0_34 = arith.constant 0 : index
    %c0_35 = arith.constant 0 : index
    %98 = vector.load %arg5[%c0_34, %c0_35] : memref<8x128xf32, #tpu.memory_space<vmem>>, vector<8x128xf32>
    %c0_36 = arith.constant 0 : index
    %c0_37 = arith.constant 0 : index
    %99 = vector.load %arg6[%c0_36, %c0_37] : memref<8x128xf32, #tpu.memory_space<vmem>>, vector<8x128xf32>
    %cst = arith.constant 5.000000e-01 : f32
    %100 = vector.broadcast %cst : f32 to vector<8x128xf32>
    %101 = arith.mulf %100, %99 : vector<8x128xf32>
    %102 = math.exp %101 : vector<8x128xf32>
    %c0_38 = arith.constant 0 : index
    %c0_39 = arith.constant 0 : index
    %103 = vector.load %arg7[%c0_38, %c0_39] : memref<8x128xf32, #tpu.memory_space<vmem>>, vector<8x128xf32>
    tpu.vector_store %arg7[%c0_38, %c0_39], %102 {strides = array<i32>} : memref<8x128xf32, #tpu.memory_space<vmem>>, vector<8x128xf32>,
    %104 = vector.shape_cast %98 : vector<8x128xf32> to vector<1x8x128xf32>
    %c0_40 = arith.constant 0 : index
    %c0_41 = arith.constant 0 : index
    %c0_42 = arith.constant 0 : index
    %105 = vector.load %arg4[%c0_40, %c0_41, %c0_42] : memref<9x8x128xf32, #tpu.memory_space<vmem>>, vector<9x8x128xf32>
    %106 = vector.shape_cast %102 : vector<8x128xf32> to vector<1x8x128xf32>
    %107 = vector.broadcast %106 : vector<1x8x128xf32> to vector<9x8x128xf32>
    %108 = arith.mulf %105, %107 : vector<9x8x128xf32>
    %109 = vector.broadcast %104 : vector<1x8x128xf32> to vector<9x8x128xf32>
    %110 = arith.addf %109, %108 : vector<9x8x128xf32>
    %c0_43 = arith.constant 0 : index
    %c0_44 = arith.constant 0 : index
    %c0_45 = arith.constant 0 : index
    %111 = vector.load %arg8[%c0_43, %c0_44, %c0_45] : memref<9x8x128xf32, #tpu.memory_space<vmem>>, vector<9x8x128xf32>
    tpu.vector_store %arg8[%c0_43, %c0_44, %c0_45], %110 {strides = array<i32>} : memref<9x8x128xf32, #tpu.memory_space<vmem>>, vector<9x8x128xf32>,
    return
  }
  func.func @transform_0(%arg0: i32, %arg1: memref<8xi32, #tpu.memory_space<smem>>) -> (i32, i32) {
    %c0_i32 = arith.constant 0 : i32
    %c0_i32_0 = arith.constant 0 : i32
    %c0_i32_1 = arith.constant 0 : i32
    return %c0_i32, %c0_i32_0 : i32, i32
  }
  func.func @transform_1(%arg0: i32, %arg1: memref<8xi32, #tpu.memory_space<smem>>) -> (i32, i32) {
    %c0_i32 = arith.constant 0 : i32
    %c0_i32_0 = arith.constant 0 : i32
    %c0_i32_1 = arith.constant 0 : i32
    return %c0_i32, %c0_i32_0 : i32, i32
  }
  func.func @transform_2(%arg0: i32, %arg1: memref<8xi32, #tpu.memory_space<smem>>) -> (i32, i32, i32) {
    %c0_i32 = arith.constant 0 : i32
    %c0_i32_0 = arith.constant 0 : i32
    %c0_i32_1 = arith.constant 0 : i32
    return %c0_i32, %arg0, %c0_i32_0 : i32, i32, i32
  }
  func.func @transform_3(%arg0: i32, %arg1: memref<8xi32, #tpu.memory_space<smem>>) -> (i32, i32) {
    %c0_i32 = arith.constant 0 : i32
    %c0_i32_0 = arith.constant 0 : i32
    return %arg0, %c0_i32 : i32, i32
  }
  func.func @transform_4(%arg0: i32, %arg1: memref<8xi32, #tpu.memory_space<smem>>) -> (i32, i32) {
    %c0_i32 = arith.constant 0 : i32
    %c0_i32_0 = arith.constant 0 : i32
    return %arg0, %c0_i32 : i32, i32
  }
  func.func @transform_5(%arg0: i32, %arg1: memref<8xi32, #tpu.memory_space<smem>>) -> (i32, i32) {
    %c0_i32 = arith.constant 0 : i32
    %c0_i32_0 = arith.constant 0 : i32
    return %arg0, %c0_i32 : i32, i32
  }
  func.func @transform_6(%arg0: i32, %arg1: memref<8xi32, #tpu.memory_space<smem>>) -> (i32, i32, i32) {
    %c0_i32 = arith.constant 0 : i32
    %c0_i32_0 = arith.constant 0 : i32
    %c0_i32_1 = arith.constant 0 : i32
    return %c0_i32, %arg0, %c0_i32_0 : i32, i32, i32
  }
}

</mosaic_0001>

<llo_original>
// kernel: tpu_custom_call.1
$region0: #{tpu_custom_call.1}
  #allocation0 [shape = 'u32[]', space=smem, size = 0x4, offset = 0x4, fixed_abs, tag = 'smem constant byte address 0x4 - core index']
  #allocation1 [shape = 'u32[72,128]{1,0:T(1,128)}', space=vmem, size = 0x9000, scoped, tag = 'internal scratch']
  #allocation2 [shape = 's32[1]{0}', space=sflag, size = 0x4, scoped, tag = 'scoped memory for tpu_custom_call.1']
  #allocation3 [shape = 'u8[512]{0}', space=smem, size = 0x200, scoped, tag = 'prefetched SMEM operand 0']
  %s0 = inlined_call_operand.hbm [shape: s32[8], index: 0, kind: input, shape index: {}]
  %s1 = inlined_call_operand.hbm [shape: f32[32,128], index: 1, kind: input, shape index: {}]
  %s2 = inlined_call_operand.hbm [shape: f32[32,128], index: 2, kind: input, shape index: {}]
  %s3 = inlined_call_operand.hbm [shape: f32[9,8,128], index: 3, kind: input, shape index: {}]
  %s4 = inlined_call_operand.hbm [shape: f32[8,128], index: 4, kind: output, shape index: {0}]
  %s5 = inlined_call_operand.hbm [shape: f32[8,128], index: 5, kind: output, shape index: {1}]
  %s6 = inlined_call_operand.hbm [shape: f32[8,128], index: 6, kind: output, shape index: {2}]
  %s7 = inlined_call_operand.hbm [shape: f32[9,8,128], index: 7, kind: output, shape index: {3}]
  %8 = xla_tuple %s4, %s5, %s6, %s7
  %s9 = sld [smem:[#allocation0]]
  $region58: #{tpu_custom_call.1} parent=0
    _
  %s11 = ssub.s32 1, %s9
  %s12 = scalar_select 0, %s11, %s9
  %s14 = sshll.u32 %s0, 4
  %s15 = int_to_ptr.hbm [resolvable:$true] %s14
  %17 = dma.hbm_to_smem %s15, 16, [#allocation3], [#allocation2]
  %19 = dma.done [#allocation2], 16
  %20 = sfence
  $region1: #{tpu_custom_call.1} parent=0
    #allocation4 [shape = 'u8[16384]{0}', space=vmem, size = 0x4000, scoped, tag = 'input window, operand 1, single buffered']
    #allocation5 [shape = 's32[1]{0}', space=sflag, size = 0x4, scoped, tag = 'scoped memory for tpu_custom_call.1']
    #allocation6 [shape = 's32[1]{0}', space=sflag, size = 0x4, scoped, tag = 'scoped memory for tpu_custom_call.1']
    #allocation7 [shape = 'u8[16384]{0}', space=vmem, size = 0x4000, scoped, tag = 'input window, operand 2, single buffered']
    #allocation8 [shape = 's32[1]{0}', space=sflag, size = 0x4, scoped, tag = 'scoped memory for tpu_custom_call.1']
    #allocation9 [shape = 'u8[36864]{0}', space=vmem, size = 0x9000, scoped, tag = 'input window, operand 3, single buffered']
    #allocation10 [shape = 'u8[4096]{0}', space=vmem, size = 0x1000, scoped, tag = 'output window, operand 0, single buffered']
    #allocation11 [shape = 'u8[4096]{0}', space=vmem, size = 0x1000, scoped, tag = 'output window, operand 1, single buffered']
    #allocation12 [shape = 's32[1]{0}', space=sflag, size = 0x4, scoped, tag = 'scoped memory for tpu_custom_call.1']
    #allocation13 [shape = 'u8[4096]{0}', space=vmem, size = 0x1000, scoped, tag = 'output window, operand 2, single buffered']
    #allocation14 [shape = 'u8[36864]{0}', space=vmem, size = 0x9000, scoped, tag = 'output window, operand 3, single buffered']
    #allocation15 [shape = 's32[1]{0}', space=sflag, size = 0x4, scoped, tag = 'scoped memory for tpu_custom_call.1']
    %21 = vsyncpa [#allocation5], 0
    %22 = vsyncpa [#allocation8], 0
    %23 = vsyncpa [#allocation6], 0
    %24 = vsyncpa [#allocation12], 0
    %25 = vsyncpa [#allocation15], 0
    // Predicated region
    $region2: #{tpu_custom_call.1} parent=1 // pred_check
      _
    $region3: #{tpu_custom_call.1} parent=1 // pred_check_branch
      %27 = sbr.rel (0) target = $region5
    $region4: #{tpu_custom_call.1} parent=1 // pred_region
      %29 = vsyncadd [#allocation5], 0
      %s30 = sshll.u32 %s1, 4
      %s31 = int_to_ptr.hbm [resolvable:$true] %s30
      %s32 = sshll.u32 [#allocation4], 4
      %s33 = int_to_ptr.vmem [resolvable:$true] %s32
      %38 = dma.hbm_to_vmem [thread:$0]  %s31, 512, %s33, [#allocation5], 128, 128, 8
    $region5: #{tpu_custom_call.1} parent=1 // pred_fallthru
      _
    // Predicated region
    $region6: #{tpu_custom_call.1} parent=1 // pred_check
      _
    $region7: #{tpu_custom_call.1} parent=1 // pred_check_branch
      %40 = sbr.rel (0) target = $region9
    $region8: #{tpu_custom_call.1} parent=1 // pred_region
      %42 = vsyncadd [#allocation8], 0
      %s43 = sshll.u32 %s2, 4
      %s44 = int_to_ptr.hbm [resolvable:$true] %s43
      %s45 = sshll.u32 [#allocation7], 4
      %s46 = int_to_ptr.vmem [resolvable:$true] %s45
      %51 = dma.hbm_to_vmem [thread:$0]  %s44, 512, %s46, [#allocation8], 128, 128, 8
    $region9: #{tpu_custom_call.1} parent=1 // pred_fallthru
      _
    // Predicated region
    $region10: #{tpu_custom_call.1} parent=1 // pred_check
      _
    $region11: #{tpu_custom_call.1} parent=1 // pred_check_branch
      %53 = sbr.rel (0) target = $region13
    $region12: #{tpu_custom_call.1} parent=1 // pred_region
      %55 = vsyncadd [#allocation8], 0
      %s56 = sshll.u32 %s3, 4
      %s57 = int_to_ptr.hbm [resolvable:$true] %s56
      %s58 = sshll.u32 [#allocation9], 4
      %s59 = int_to_ptr.vmem [resolvable:$true] %s58
      %64 = dma.hbm_to_vmem [thread:$0]  %s57, 1152, %s59, [#allocation8], 128, 128, 8
    $region13: #{tpu_custom_call.1} parent=1 // pred_fallthru
      _
    // Predicated region
    $region14: #{tpu_custom_call.1} parent=1 // pred_check
      _
    $region15: #{tpu_custom_call.1} parent=1 // pred_check_branch
      %66 = sbr.rel (0) target = $region17
    $region16: #{tpu_custom_call.1} parent=1 // pred_region
      %68 = dma.done [#allocation5], 512
    $region17: #{tpu_custom_call.1} parent=1 // pred_fallthru
      _
    // Predicated region
    $region18: #{tpu_custom_call.1} parent=1 // pred_check
      _
    $region19: #{tpu_custom_call.1} parent=1 // pred_check_branch
      %70 = sbr.rel (0) target = $region21
    $region20: #{tpu_custom_call.1} parent=1 // pred_region
      %72 = dma.done [#allocation8], 512
    $region21: #{tpu_custom_call.1} parent=1 // pred_fallthru
      _
    // Predicated region
    $region22: #{tpu_custom_call.1} parent=1 // pred_check
      _
    $region23: #{tpu_custom_call.1} parent=1 // pred_check_branch
      %74 = sbr.rel (0) target = $region25
    $region24: #{tpu_custom_call.1} parent=1 // pred_region
      %76 = dma.done [#allocation8], 1152
    $region25: #{tpu_custom_call.1} parent=1 // pred_fallthru
      _
    %s77 = smul.u32 0, 8
    %s78 = sld [smem:[#allocation3 + %s77]]
    %s79 = scalar_lea.vmem [#allocation4], %s78
    %v80 = vld [vmem:[%s79] sm:$0x1]
    %81 = vst [vmem:[#allocation10] sm:$0x1] %v80
    %s82 = scalar_lea.vmem [#allocation7], %s78
    %v83 = vld [vmem:[%s82] sm:$0x1]
    %84 = vst [vmem:[#allocation11] sm:$0x1] %v83
    %s85 = sadd.s32 %s77, 1
    %s86 = sld [smem:[#allocation3 + %s85]]
    %s87 = scalar_lea.vmem [#allocation4], %s86
    %v88 = vld [vmem:[%s87] sm:$0x1]
    %89 = vst [vmem:[#allocation10 + $0x1] sm:$0x1] %v88
    %s90 = scalar_lea.vmem [#allocation7], %s86
    %v91 = vld [vmem:[%s90] sm:$0x1]
    %92 = vst [vmem:[#allocation11 + $0x1] sm:$0x1] %v91
    %s93 = sadd.s32 %s77, 2
    %s94 = sld [smem:[#allocation3 + %s93]]
    %s95 = scalar_lea.vmem [#allocation4], %s94
    %v96 = vld [vmem:[%s95] sm:$0x1]
    %97 = vst [vmem:[#allocation10 + $0x2] sm:$0x1] %v96
    %s98 = scalar_lea.vmem [#allocation7], %s94
    %v99 = vld [vmem:[%s98] sm:$0x1]
    %100 = vst [vmem:[#allocation11 + $0x2] sm:$0x1] %v99
    %s101 = sadd.s32 %s77, 3
    %s102 = sld [smem:[#allocation3 + %s101]]
    %s103 = scalar_lea.vmem [#allocation4], %s102
    %v104 = vld [vmem:[%s103] sm:$0x1]
    %105 = vst [vmem:[#allocation10 + $0x3] sm:$0x1] %v104
    %s106 = scalar_lea.vmem [#allocation7], %s102
    %v107 = vld [vmem:[%s106] sm:$0x1]
    %108 = vst [vmem:[#allocation11 + $0x3] sm:$0x1] %v107
    %s109 = sadd.s32 %s77, 4
    %s110 = sld [smem:[#allocation3 + %s109]]
    %s111 = scalar_lea.vmem [#allocation4], %s110
    %v112 = vld [vmem:[%s111] sm:$0x1]
    %113 = vst [vmem:[#allocation10 + $0x4] sm:$0x1] %v112
    %s114 = scalar_lea.vmem [#allocation7], %s110
    %v115 = vld [vmem:[%s114] sm:$0x1]
    %116 = vst [vmem:[#allocation11 + $0x4] sm:$0x1] %v115
    %s117 = sadd.s32 %s77, 5
    %s118 = sld [smem:[#allocation3 + %s117]]
    %s119 = scalar_lea.vmem [#allocation4], %s118
    %v120 = vld [vmem:[%s119] sm:$0x1]
    %121 = vst [vmem:[#allocation10 + $0x5] sm:$0x1] %v120
    %s122 = scalar_lea.vmem [#allocation7], %s118
    %v123 = vld [vmem:[%s122] sm:$0x1]
    %124 = vst [vmem:[#allocation11 + $0x5] sm:$0x1] %v123
    %s125 = sadd.s32 %s77, 6
    %s126 = sld [smem:[#allocation3 + %s125]]
    %s127 = scalar_lea.vmem [#allocation4], %s126
    %v128 = vld [vmem:[%s127] sm:$0x1]
    %129 = vst [vmem:[#allocation10 + $0x6] sm:$0x1] %v128
    %s130 = scalar_lea.vmem [#allocation7], %s126
    %v131 = vld [vmem:[%s130] sm:$0x1]
    %132 = vst [vmem:[#allocation11 + $0x6] sm:$0x1] %v131
    %s133 = sadd.s32 %s77, 7
    %s134 = sld [smem:[#allocation3 + %s133]]
    %s135 = scalar_lea.vmem [#allocation4], %s134
    %v136 = vld [vmem:[%s135] sm:$0x1]
    %137 = vst [vmem:[#allocation10 + $0x7] sm:$0x1] %v136
    %s138 = scalar_lea.vmem [#allocation7], %s134
    %v139 = vld [vmem:[%s138] sm:$0x1]
    %140 = vst [vmem:[#allocation11 + $0x7] sm:$0x1] %v139
    %v141 = vld [vmem:[#allocation10] sm:$0xff]
    %v142 = vld [vmem:[#allocation11] sm:$0xff]
    %v143 = vmul.f32 %v142, 0.5
    %v144 = vmul.f32 %v143, 1.442695
    %v145 = vpow.pop %v144
    %146 = vst [vmem:[#allocation13] sm:$0xff] %v145
    %v147 = vld [vmem:[#allocation9] sm:$0xff]
    %v148 = vld [vmem:[#allocation9 + $0x8] sm:$0xff]
    %v149 = vld [vmem:[#allocation9 + $0x10] sm:$0xff]
    %v150 = vld [vmem:[#allocation9 + $0x18] sm:$0xff]
    %v151 = vld [vmem:[#allocation9 + $0x20] sm:$0xff]
    %v152 = vld [vmem:[#allocation9 + $0x28] sm:$0xff]
    %v153 = vld [vmem:[#allocation9 + $0x30] sm:$0xff]
    %v154 = vld [vmem:[#allocation9 + $0x38] sm:$0xff]
    %v155 = vld [vmem:[#allocation9 + $0x40] sm:$0xff]
    %v156 = vmul.f32 %v147, %v145
    %v157 = vmul.f32 %v148, %v145
    %v158 = vmul.f32 %v149, %v145
    %v159 = vmul.f32 %v150, %v145
    %v160 = vmul.f32 %v151, %v145
    %v161 = vmul.f32 %v152, %v145
    %v162 = vmul.f32 %v153, %v145
    %v163 = vmul.f32 %v154, %v145
    %v164 = vmul.f32 %v155, %v145
    %v165 = vadd.f32 %v141, %v156
    %v166 = vadd.f32 %v141, %v157
    %v167 = vadd.f32 %v141, %v158
    %v168 = vadd.f32 %v141, %v159
    %v169 = vadd.f32 %v141, %v160
    %v170 = vadd.f32 %v141, %v161
    %v171 = vadd.f32 %v141, %v162
    %v172 = vadd.f32 %v141, %v163
    %v173 = vadd.f32 %v141, %v164
    %174 = vst [vmem:[#allocation14] sm:$0xff] %v165
    %175 = vst [vmem:[#allocation14 + $0x8] sm:$0xff] %v166
    %176 = vst [vmem:[#allocation14 + $0x10] sm:$0xff] %v167
    %177 = vst [vmem:[#allocation14 + $0x18] sm:$0xff] %v168
    %178 = vst [vmem:[#allocation14 + $0x20] sm:$0xff] %v169
    %179 = vst [vmem:[#allocation14 + $0x28] sm:$0xff] %v170
    %180 = vst [vmem:[#allocation14 + $0x30] sm:$0xff] %v171
    %181 = vst [vmem:[#allocation14 + $0x38] sm:$0xff] %v172
    %182 = vst [vmem:[#allocation14 + $0x40] sm:$0xff] %v173
    // Predicated region
    $region26: #{tpu_custom_call.1} parent=1 // pred_check
      _
    $region27: #{tpu_custom_call.1} parent=1 // pred_check_branch
      %184 = sbr.rel (0) target = $region29
    $region28: #{tpu_custom_call.1} parent=1 // pred_region
      %186 = vsyncadd [#allocation6], 0
      %s188 = sshll.u32 [#allocation10], 4
      %s189 = int_to_ptr.vmem [resolvable:$true] %s188
      %s190 = sshll.u32 %s4, 4
      %s191 = int_to_ptr.hbm [resolvable:$true] %s190
      %193 = dma.vmem_to_hbm [thread:$0]  %s189, 128, %s191, [#allocation6]
    $region29: #{tpu_custom_call.1} parent=1 // pred_fallthru
      _
    // Predicated region
    $region30: #{tpu_custom_call.1} parent=1 // pred_check
      _
    $region31: #{tpu_custom_call.1} parent=1 // pred_check_branch
      %195 = sbr.rel (0) target = $region33
    $region32: #{tpu_custom_call.1} parent=1 // pred_region
      %197 = vsyncadd [#allocation12], 0
      %s199 = sshll.u32 [#allocation11], 4
      %s200 = int_to_ptr.vmem [resolvable:$true] %s199
      %s201 = sshll.u32 %s5, 4
      %s202 = int_to_ptr.hbm [resolvable:$true] %s201
      %204 = dma.vmem_to_hbm [thread:$0]  %s200, 128, %s202, [#allocation12]
    $region33: #{tpu_custom_call.1} parent=1 // pred_fallthru
      _
    // Predicated region
    $region34: #{tpu_custom_call.1} parent=1 // pred_check
      _
    $region35: #{tpu_custom_call.1} parent=1 // pred_check_branch
      %206 = sbr.rel (0) target = $region37
    $region36: #{tpu_custom_call.1} parent=1 // pred_region
      %208 = vsyncadd [#allocation12], 0
      %s210 = sshll.u32 [#allocation13], 4
      %s211 = int_to_ptr.vmem [resolvable:$true] %s210
      %s212 = sshll.u32 %s6, 4
      %s213 = int_to_ptr.hbm [resolvable:$true] %s212
      %215 = dma.vmem_to_hbm [thread:$0]  %s211, 128, %s213, [#allocation12]
    $region37: #{tpu_custom_call.1} parent=1 // pred_fallthru
      _
    // Predicated region
    $region38: #{tpu_custom_call.1} parent=1 // pred_check
      _
    $region39: #{tpu_custom_call.1} parent=1 // pred_check_branch
      %217 = sbr.rel (0) target = $region41
    $region40: #{tpu_custom_call.1} parent=1 // pred_region
      %219 = vsyncadd [#allocation15], 0
      %s220 = sshll.u32 [#allocation14], 4
      %s221 = int_to_ptr.vmem [resolvable:$true] %s220
      %s222 = sshll.u32 %s7, 4
      %s223 = int_to_ptr.hbm [resolvable:$true] %s222
      %228 = dma.vmem_to_hbm [thread:$0]  %s221, 1152, %s223, [#allocation15], 128, 128, 8
    $region41: #{tpu_custom_call.1} parent=1 // pred_fallthru
      _
    // Predicated region
    $region42: #{tpu_custom_call.1} parent=1 // pred_check
      _
    $region43: #{tpu_custom_call.1} parent=1 // pred_check_branch
      %230 = sbr.rel (0) target = $region45
    $region44: #{tpu_custom_call.1} parent=1 // pred_region
      %232 = dma.done [#allocation6], 128
    $region45: #{tpu_custom_call.1} parent=1 // pred_fallthru
      _
    // Predicated region
    $region46: #{tpu_custom_call.1} parent=1 // pred_check
      _
    $region47: #{tpu_custom_call.1} parent=1 // pred_check_branch
      %234 = sbr.rel (0) target = $region49
    $region48: #{tpu_custom_call.1} parent=1 // pred_region
      %236 = dma.done [#allocation12], 128
    $region49: #{tpu_custom_call.1} parent=1 // pred_fallthru
      _
    // Predicated region
    $region50: #{tpu_custom_call.1} parent=1 // pred_check
      _
    $region51: #{tpu_custom_call.1} parent=1 // pred_check_branch
      %238 = sbr.rel (0) target = $region53
    $region52: #{tpu_custom_call.1} parent=1 // pred_region
      %240 = dma.done [#allocation12], 128
    $region53: #{tpu_custom_call.1} parent=1 // pred_fallthru
      _
    // Predicated region
    $region54: #{tpu_custom_call.1} parent=1 // pred_check
      _
    $region55: #{tpu_custom_call.1} parent=1 // pred_check_branch
      %242 = sbr.rel (0) target = $region57
    $region56: #{tpu_custom_call.1} parent=1 // pred_region
      %244 = dma.done [#allocation15], 1152
    $region57: #{tpu_custom_call.1} parent=1 // pred_fallthru
      _
    %245 = vsyncpa [#allocation5], 1
    %246 = vsyncpa [#allocation8], 1
    %247 = vsyncpa [#allocation6], 1
    %248 = vsyncpa [#allocation12], 1
    %249 = vsyncpa [#allocation15], 1

</llo_original>
